<compile_context>
chip_gen: v7x
topology: tpu7x:2x2x1
jax: 0.10.0
libtpu: 0.0.40
codegen_flags: <defaults>
</compile_context>

<pallas_src>
import jax
import jax.numpy as jnp
from jax.experimental import pallas as pl
from jax.experimental.pallas import tpu as pltpu

BN_EPS = 1e-5


def _round_up(x, m):
    return (x + m - 1) // m * m


def _style_kernel(alpha_ref, x_ref, w1_ref, b1_ref, w2_ref, b2_ref, out_ref):
    # fc1_1 (+ folded bn1_1): MXU matmul, f32 accumulation.
    h = jnp.dot(x_ref[...], w1_ref[...], preferred_element_type=jnp.float32)
    h = h + b1_ref[...]                          # (TB, H) f32

    # relu1_1 = PReLU with a single shared slope (scalar from SMEM).
    a = alpha_ref[0]
    h = jnp.where(h >= 0.0, h, a * h)

    # drop1_1: identity in eval mode.

    # fc3_1 (+ folded bn3_1).
    h = h.astype(w2_ref.dtype)
    o = jnp.dot(h, w2_ref[...], preferred_element_type=jnp.float32)
    o = o + b2_ref[...]                          # (TB, C_pad) f32

    # tanh -> EUP
    out_ref[...] = jnp.tanh(o).astype(out_ref.dtype)


def style_model_lessfc_forward(x, params, *, compute_dtype=jnp.float32,
                               block_batch=None):
    """x: (B, inputsize) f32. params: dict (see init_params). Returns (B, C) f32."""
    B, D = x.shape
    H = params["w1"].shape[1]
    C = params["w2"].shape[1]

    # ---- Fold eval-mode BatchNorm into the fc weights / biases (in f32) ----
    s1 = params["bn1_gamma"] / jnp.sqrt(params["bn1_var"] + BN_EPS)        # (1, H)
    w1 = params["w1"] * s1                                                 # (D, H)
    b1 = (params["b1"] - params["bn1_mean"]) * s1 + params["bn1_beta"]     # (1, H)
    s2 = params["bn2_gamma"] / jnp.sqrt(params["bn2_var"] + BN_EPS)        # (1, C)
    w2 = params["w2"] * s2                                                 # (H, C)
    b2 = (params["b2"] - params["bn2_mean"]) * s2 + params["bn2_beta"]     # (1, C)

    # ---- Pad to lane/sublane friendly shapes (zeros -> math unchanged) ----
    D_pad = _round_up(D, 128)
    H_pad = _round_up(H, 128)
    C_pad = _round_up(C, 128)
    if block_batch is None:
        block_batch = min(_round_up(B, 8), 256)
    TB = _round_up(block_batch, 8)
    B_pad = _round_up(B, TB)
    num_blocks = B_pad // TB

    x_p = jnp.zeros((B_pad, D_pad), compute_dtype).at[:B, :D].set(
        x.astype(compute_dtype))
    w1_p = jnp.zeros((D_pad, H_pad), compute_dtype).at[:D, :H].set(
        w1.astype(compute_dtype))
    w2_p = jnp.zeros((H_pad, C_pad), compute_dtype).at[:H, :C].set(
        w2.astype(compute_dtype))
    b1_p = jnp.zeros((1, H_pad), jnp.float32).at[:, :H].set(
        b1.astype(jnp.float32))
    b2_p = jnp.zeros((1, C_pad), jnp.float32).at[:, :C].set(
        b2.astype(jnp.float32))
    alpha = params["prelu_alpha"].reshape((1,)).astype(jnp.float32)

    # ---- VMEM budget: double-buffered activations + resident weights ----
    isz = jnp.dtype(compute_dtype).itemsize
    vmem_est = (2 * TB * D_pad * isz                    # x tile (double-buffered)
                + 2 * TB * C_pad * 4                    # out tile (f32, dbl-buf)
                + 2 * (D_pad * H_pad + H_pad * C_pad) * isz  # weights (x2, conservative)
                + 2 * (H_pad + C_pad) * 4 * 2           # biases
                + TB * H_pad * 4)                       # hidden activation live range
    vmem_limit = int(min(max(vmem_est + (4 << 20), 32 << 20), 64 << 20))

    grid_spec = pltpu.PrefetchScalarGridSpec(
        num_scalar_prefetch=1,                  # prelu alpha -> SMEM scalar
        grid=(num_blocks,),
        in_specs=[
            pl.BlockSpec((TB, D_pad), lambda i, alpha: (i, 0)),     # x tile
            pl.BlockSpec((D_pad, H_pad), lambda i, alpha: (0, 0)),  # w1 (resident)
            pl.BlockSpec((1, H_pad), lambda i, alpha: (0, 0)),      # b1
            pl.BlockSpec((H_pad, C_pad), lambda i, alpha: (0, 0)),  # w2 (resident)
            pl.BlockSpec((1, C_pad), lambda i, alpha: (0, 0)),      # b2
        ],
        out_specs=pl.BlockSpec((TB, C_pad), lambda i, alpha: (i, 0)),
    )

    out = pl.pallas_call(
        _style_kernel,
        out_shape=jax.ShapeDtypeStruct((B_pad, C_pad), jnp.float32),
        grid_spec=grid_spec,
        compiler_params=pltpu.CompilerParams(
            dimension_semantics=("parallel",),
            vmem_limit_bytes=vmem_limit,
        ),
    )(alpha, x_p, w1_p, b1_p, w2_p, b2_p)

    return out[:B, :C]


def init_params(key, inputsize, num_classes, hidden=1024):
    """Deterministic synthetic params matching the PyTorch module's shapes.
    Linear weights are stored transposed relative to PyTorch (out,in)."""
    k1, k2, k3, k4, k5, k6 = jax.random.split(key, 6)
    w1 = (jax.random.normal(k1, (inputsize, hidden), jnp.float32) *
          (1.0 / jnp.sqrt(inputsize)))
    b1 = jax.random.normal(k2, (1, hidden), jnp.float32) * 0.01
    w2 = (jax.random.normal(k3, (hidden, num_classes), jnp.float32) *
          (1.0 / jnp.sqrt(hidden)))
    b2 = jax.random.normal(k4, (1, num_classes), jnp.float32) * 0.01
    bn1_gamma = jnp.ones((1, hidden), jnp.float32) + 0.1 * jax.random.normal(
        k5, (1, hidden))
    bn1_beta = jnp.zeros((1, hidden), jnp.float32)
    bn1_mean = jnp.zeros((1, hidden), jnp.float32)
    bn1_var = jnp.ones((1, hidden), jnp.float32)
    bn2_gamma = jnp.ones((1, num_classes), jnp.float32) + 0.1 * jax.random.normal(
        k6, (1, num_classes))
    bn2_beta = jnp.zeros((1, num_classes), jnp.float32)
    bn2_mean = jnp.zeros((1, num_classes), jnp.float32)
    bn2_var = jnp.ones((1, num_classes), jnp.float32)
    prelu_alpha = jnp.full((1, 1), 0.25, jnp.float32)   # PyTorch PReLU default
    return dict(
        w1=w1, b1=b1,
        bn1_gamma=bn1_gamma, bn1_beta=bn1_beta, bn1_mean=bn1_mean, bn1_var=bn1_var,
        prelu_alpha=prelu_alpha,
        w2=w2, b2=b2,
        bn2_gamma=bn2_gamma, bn2_beta=bn2_beta, bn2_mean=bn2_mean, bn2_var=bn2_var,
    )


def reference_forward(x, p):
    """Pure-JAX f32 reference of the same eval-mode forward (un-folded BN)."""
    h = x @ p["w1"] + p["b1"]
    h = (h - p["bn1_mean"]) / jnp.sqrt(p["bn1_var"] + BN_EPS) * p["bn1_gamma"] + p["bn1_beta"]
    h = jnp.where(h >= 0, h, p["prelu_alpha"][0, 0] * h)
    o = h @ p["w2"] + p["b2"]
    o = (o - p["bn2_mean"]) / jnp.sqrt(p["bn2_var"] + BN_EPS) * p["bn2_gamma"] + p["bn2_beta"]
    return jnp.tanh(o)


if __name__ == "__main__":
    key = jax.random.PRNGKey(0)
    kx, kp = jax.random.split(key)

    batch = 16
    inputsize = 32          # small stand-in for the feature dim
    num_classes = 4
    keep_probability = 0.5  # unused in eval forward (dropout is identity)

    params = init_params(kp, inputsize, num_classes)
    x = jax.random.normal(kx, (batch, inputsize), jnp.float32)

    ref = reference_forward(x, params)

    # f32 path: tight check against the un-folded reference.
    out_f32 = style_model_lessfc_forward(
        x, params, compute_dtype=jnp.float32, block_batch=8)
    out_f32 = jax.block_until_ready(out_f32)
    assert out_f32.shape == (batch, num_classes)
    assert jnp.allclose(out_f32, ref, atol=1e-4, rtol=1e-4)

    # bf16 path (halved HBM traffic, native MXU bf16): looser tolerance.
    out_bf16 = style_model_lessfc_forward(
        x, params, compute_dtype=jnp.bfloat16, block_batch=8)
    out_bf16 = jax.block_until_ready(out_bf16)
    assert out_bf16.shape == (batch, num_classes)
    assert jnp.allclose(out_bf16, ref, atol=5e-2, rtol=5e-2)

    print("KERNEL_OK")
</pallas_src>

<mosaic_0001>
module attributes {stable_mosaic.version = 11 : i64} {
  func.func @_style_kernel(%arg0: i32, %arg1: memref<1xf32, #tpu.memory_space<smem>>, %arg2: memref<8x128xf32, #tpu.memory_space<vmem>>, %arg3: memref<128x1024xf32, #tpu.memory_space<vmem>>, %arg4: memref<1x1024xf32, #tpu.memory_space<vmem>>, %arg5: memref<1024x128xf32, #tpu.memory_space<vmem>>, %arg6: memref<1x128xf32, #tpu.memory_space<vmem>>, %arg7: memref<8x128xf32, #tpu.memory_space<vmem>>) attributes {dimension_semantics = [#tpu.dimension_semantics<parallel>], iteration_bounds = array<i64: 2>, scalar_prefetch = 1 : i64, scratch_operands = 0 : i64, tpu.core_type = #tpu.core_type<tc>, window_params = [{transform_indices = @transform_0, window_bounds = array<i64: 8, 128>}, {pipeline_mode = #tpu.pipeline_mode<synchronous>, transform_indices = @transform_1, window_bounds = array<i64: 128, 1024>}, {pipeline_mode = #tpu.pipeline_mode<synchronous>, transform_indices = @transform_2, window_bounds = array<i64: 1, 1024>}, {pipeline_mode = #tpu.pipeline_mode<synchronous>, transform_indices = @transform_3, window_bounds = array<i64: 1024, 128>}, {pipeline_mode = #tpu.pipeline_mode<synchronous>, transform_indices = @transform_4, window_bounds = array<i64: 1, 128>}, {transform_indices = @transform_5, window_bounds = array<i64: 8, 128>}]} {
    %c0 = arith.constant 0 : index
    %c0_0 = arith.constant 0 : index
    %0 = vector.load %arg2[%c0, %c0_0] : memref<8x128xf32, #tpu.memory_space<vmem>>, vector<8x128xf32>
    %c0_1 = arith.constant 0 : index
    %c0_2 = arith.constant 0 : index
    %1 = vector.load %arg3[%c0_1, %c0_2] : memref<128x1024xf32, #tpu.memory_space<vmem>>, vector<128x1024xf32>
    %cst = arith.constant dense<0.000000e+00> : vector<8x1024xf32>
    %2 = tpu.matmul %0, %1, %cst {dimension_numbers = #tpu.dot_dimension_numbers<[1], [0], [0], [1], [0, 0, 1, 1], [], []>} : vector<8x128xf32>, vector<128x1024xf32>, vector<8x1024xf32> -> vector<8x1024xf32>
    %c0_3 = arith.constant 0 : index
    %c0_4 = arith.constant 0 : index
    %3 = vector.load %arg4[%c0_3, %c0_4] : memref<1x1024xf32, #tpu.memory_space<vmem>>, vector<1x1024xf32>
    %4 = vector.broadcast %3 : vector<1x1024xf32> to vector<8x1024xf32>
    %5 = arith.addf %2, %4 : vector<8x1024xf32>
    %c0_5 = arith.constant 0 : index
    %6 = memref.load %arg1[%c0_5] : memref<1xf32, #tpu.memory_space<smem>>
    %cst_6 = arith.constant 0.000000e+00 : f32
    %7 = vector.broadcast %cst_6 : f32 to vector<8x1024xf32>
    %8 = arith.cmpf oge, %5, %7 : vector<8x1024xf32>
    %9 = vector.broadcast %6 : f32 to vector<8x1024xf32>
    %10 = arith.mulf %9, %5 : vector<8x1024xf32>
    %11 = arith.select %8, %5, %10 : vector<8x1024xi1>, vector<8x1024xf32>
    %c0_7 = arith.constant 0 : index
    %c0_8 = arith.constant 0 : index
    %12 = vector.load %arg5[%c0_7, %c0_8] : memref<1024x128xf32, #tpu.memory_space<vmem>>, vector<1024x128xf32>
    %cst_9 = arith.constant dense<0.000000e+00> : vector<8x128xf32>
    %13 = tpu.matmul %11, %12, %cst_9 {dimension_numbers = #tpu.dot_dimension_numbers<[1], [0], [0], [1], [0, 0, 1, 1], [], []>} : vector<8x1024xf32>, vector<1024x128xf32>, vector<8x128xf32> -> vector<8x128xf32>
    %c0_10 = arith.constant 0 : index
    %c0_11 = arith.constant 0 : index
    %14 = vector.load %arg6[%c0_10, %c0_11] : memref<1x128xf32, #tpu.memory_space<vmem>>, vector<1x128xf32>
    %15 = vector.broadcast %14 : vector<1x128xf32> to vector<8x128xf32>
    %16 = arith.addf %13, %15 : vector<8x128xf32>
    %17 = math.tanh %16 : vector<8x128xf32>
    %c0_12 = arith.constant 0 : index
    %c0_13 = arith.constant 0 : index
    %18 = vector.load %arg7[%c0_12, %c0_13] : memref<8x128xf32, #tpu.memory_space<vmem>>, vector<8x128xf32>
    tpu.vector_store %arg7[%c0_12, %c0_13], %17 {strides = array<i32>} : memref<8x128xf32, #tpu.memory_space<vmem>>, vector<8x128xf32>,
    return
  }
  func.func @transform_0(%arg0: i32, %arg1: memref<1xf32, #tpu.memory_space<smem>>) -> (i32, i32) {
    %c0_i32 = arith.constant 0 : i32
    %c0_i32_0 = arith.constant 0 : i32
    return %arg0, %c0_i32 : i32, i32
  }
  func.func @transform_1(%arg0: i32, %arg1: memref<1xf32, #tpu.memory_space<smem>>) -> (i32, i32) {
    %c0_i32 = arith.constant 0 : i32
    %c0_i32_0 = arith.constant 0 : i32
    %c0_i32_1 = arith.constant 0 : i32
    return %c0_i32, %c0_i32_0 : i32, i32
  }
  func.func @transform_2(%arg0: i32, %arg1: memref<1xf32, #tpu.memory_space<smem>>) -> (i32, i32) {
    %c0_i32 = arith.constant 0 : i32
    %c0_i32_0 = arith.constant 0 : i32
    %c0_i32_1 = arith.constant 0 : i32
    return %c0_i32, %c0_i32_0 : i32, i32
  }
  func.func @transform_3(%arg0: i32, %arg1: memref<1xf32, #tpu.memory_space<smem>>) -> (i32, i32) {
    %c0_i32 = arith.constant 0 : i32
    %c0_i32_0 = arith.constant 0 : i32
    %c0_i32_1 = arith.constant 0 : i32
    return %c0_i32, %c0_i32_0 : i32, i32
  }
  func.func @transform_4(%arg0: i32, %arg1: memref<1xf32, #tpu.memory_space<smem>>) -> (i32, i32) {
    %c0_i32 = arith.constant 0 : i32
    %c0_i32_0 = arith.constant 0 : i32
    %c0_i32_1 = arith.constant 0 : i32
    return %c0_i32, %c0_i32_0 : i32, i32
  }
  func.func @transform_5(%arg0: i32, %arg1: memref<1xf32, #tpu.memory_space<smem>>) -> (i32, i32) {
    %c0_i32 = arith.constant 0 : i32
    %c0_i32_0 = arith.constant 0 : i32
    return %arg0, %c0_i32 : i32, i32
  }
}

</mosaic_0001>

<llo_original>
// kernel: tpu_custom_call.1
$region0: #{tpu_custom_call.1}
  #allocation0 [shape = 'u32[]', space=smem, size = 0x4, offset = 0x4, fixed_abs, tag = 'smem constant byte address 0x4 - core index']
  #allocation1 [shape = 'u32[144,128]{1,0:T(1,128)}', space=vmem, size = 0x12000, scoped, tag = 'internal scratch']
  #allocation2 [shape = 's32[1]{0}', space=sflag, size = 0x4, scoped, tag = 'scoped memory for tpu_custom_call.1']
  #allocation3 [shape = 'f32[1]{0:T(128)S(6)}', space=smem, size = 0x200, scoped, tag = 'prefetched SMEM operand 0']
  %s0 = inlined_call_operand.<no memory space> [shape: f32[1], index: 0, kind: input, shape index: {}]
  %s1 = inlined_call_operand.hbm [shape: f32[16,128], index: 1, kind: input, shape index: {}]
  %s2 = inlined_call_operand.hbm [shape: f32[128,1024], index: 2, kind: input, shape index: {}]
  %s3 = inlined_call_operand.vmem [shape: f32[1,1024], index: 3, kind: input, shape index: {}]
  %s4 = inlined_call_operand.hbm [shape: f32[1024,128], index: 4, kind: input, shape index: {}]
  %s5 = inlined_call_operand.vmem [shape: f32[1,128], index: 5, kind: input, shape index: {}]
  %s6 = inlined_call_operand.hbm [shape: f32[16,128], index: 6, kind: output, shape index: {}]
  %s7 = sld [smem:[#allocation0]]
  $region65: #{tpu_custom_call.1} parent=0
    _
  %s9 = ssub.s32 1, %s7
  %s10 = scalar_select 0, %s9, %s7
  %11 = sst [smem:[#allocation3]] %s0
  $region1: #{tpu_custom_call.1} parent=0
    #allocation4 [shape = 'u8[8192]{0}', space=vmem, size = 0x2000, scoped, tag = 'input window, operand 1']
    #allocation5 [shape = 's32[2]{0}', space=sflag, size = 0x8, scoped, tag = 'scoped memory for tpu_custom_call.1']
    #allocation6 [shape = 's32[2]{0}', space=sflag, size = 0x8, scoped, tag = 'scoped memory for tpu_custom_call.1']
    #allocation7 [shape = 'u8[524288]{0}', space=vmem, size = 0x80000, scoped, tag = 'input window, operand 2, single buffered']
    #allocation8 [shape = 's32[1]{0}', space=sflag, size = 0x4, scoped, tag = 'scoped memory for tpu_custom_call.1']
    #allocation9 [shape = 'u8[524288]{0}', space=vmem, size = 0x80000, scoped, tag = 'input window, operand 4, single buffered']
    #allocation10 [shape = 'u8[8192]{0}', space=vmem, size = 0x2000, scoped, tag = 'output window, operand 0']
    %12 = vsyncpa [#allocation5], 0
    %s13 = scalar_lea.sflag [#allocation5], 1
    %14 = vsyncpa %s13, 0
    %15 = vsyncpa [#allocation8], 0
    %16 = vsyncpa [#allocation6], 0
    %s17 = scalar_lea.sflag [#allocation6], 1
    %18 = vsyncpa %s17, 0
    loop: start=0, step=1, limit=4
    $region2: #{tpu_custom_call.1} parent=1 // loop_pre_header
      _
    $region3: #{tpu_custom_call.1} parent=1 // loop_header
      %s20 = sphi 0, %s24
      %p21 = scmp.ge.s32.totalorder %s20, 4
      %s30 = sphi 0, %s32
      %s33 = sphi 0, %s30
      %s34 = sphi 0, %s33
      %s50 = sphi 0, %s34
      %s54 = sphi 0, %s54
      %s56 = sphi 0, %s54
      %s57 = sphi 0, %s56
      %s71 = sphi 0, %s57
      %s75 = sphi 0, %s75
      %s77 = sphi 0, %s75
      %s78 = sphi 0, %s77
      %s92 = sphi 0, %s78
      %s96 = sphi 0, %s96
      %s98 = sphi 0, %s96
      %s99 = sphi 0, %s98
      %s113 = sphi 0, %s99
      %s117 = sphi 0, %s117
      %s119 = sphi 0, %s117
      %s120 = sphi 0, %s119
      %s134 = sphi 0, %s120
      %s140 = sphi 0, %s142
      %s143 = sphi 0, %s140
      %s144 = sphi 0, %s143
      %s160 = sphi 0, %s144
    $region4: #{tpu_custom_call.1} parent=1 // loop_header_branch
      %23 = sbr.rel (%p21) target = $region8
    $region5: #{tpu_custom_call.1} parent=1 // loop_body
      %s25 = ssub.s32 %s20, 1
      %s26 = ssub.s32 %s20, 2
      %s27 = sadd.s32 %s20, 1
      %s28 = ssub.s32 %s20, %s27
      %p29 = scmp.eq.s32.totalorder %s28, 0
      %s31 = sadd.s32 %s30, 1
      %s32 = scalar_select %p29, %s30, %s31
      %p35 = pneg %p29
      %p36 = scmp.eq.s32.totalorder %s20, 1
      %p37 = por %p35, %p36
      %p38 = scmp.ne.s32.totalorder %s30, %s33
      %p39 = scmp.eq.s32.totalorder %s20, 0
      %p40 = por %p38, %p39
      %p41 = scmp.ne.s32.totalorder %s30, %s33
      %p42 = scmp.eq.s32.totalorder %s25, 1
      %p43 = por %p41, %p42
      %p44 = scmp.ne.s32.totalorder %s33, %s34
      %p45 = scmp.eq.s32.totalorder %s25, 0
      %p46 = por %p44, %p45
      %p47 = scmp.ne.s32.totalorder %s33, %s34
      %p48 = scmp.eq.s32.totalorder %s26, 1
      %p49 = por %p47, %p48
      %p51 = scmp.ne.s32.totalorder %s34, %s50
      %p52 = scmp.eq.s32.totalorder %s26, 0
      %p53 = por %p51, %p52
      %s55 = sadd.s32 %s54, 1
      %p58 = scmp.eq.s32.totalorder %s20, 1
      %p59 = scmp.ne.s32.totalorder %s54, %s56
      %p60 = scmp.eq.s32.totalorder %s20, 0
      %p61 = por %p59, %p60
      %p62 = scmp.ne.s32.totalorder %s54, %s56
      %p63 = scmp.eq.s32.totalorder %s25, 1
      %p64 = por %p62, %p63
      %p65 = scmp.ne.s32.totalorder %s56, %s57
      %p66 = scmp.eq.s32.totalorder %s25, 0
      %p67 = por %p65, %p66
      %p68 = scmp.ne.s32.totalorder %s56, %s57
      %p69 = scmp.eq.s32.totalorder %s26, 1
      %p70 = por %p68, %p69
      %p72 = scmp.ne.s32.totalorder %s57, %s71
      %p73 = scmp.eq.s32.totalorder %s26, 0
      %p74 = por %p72, %p73
      %s76 = sadd.s32 %s75, 1
      %p79 = scmp.eq.s32.totalorder %s20, 1
      %p80 = scmp.ne.s32.totalorder %s75, %s77
      %p81 = scmp.eq.s32.totalorder %s20, 0
      %p82 = por %p80, %p81
      %p83 = scmp.ne.s32.totalorder %s75, %s77
      %p84 = scmp.eq.s32.totalorder %s25, 1
      %p85 = por %p83, %p84
      %p86 = scmp.ne.s32.totalorder %s77, %s78
      %p87 = scmp.eq.s32.totalorder %s25, 0
      %p88 = por %p86, %p87
      %p89 = scmp.ne.s32.totalorder %s77, %s78
      %p90 = scmp.eq.s32.totalorder %s26, 1
      %p91 = por %p89, %p90
      %p93 = scmp.ne.s32.totalorder %s78, %s92
      %p94 = scmp.eq.s32.totalorder %s26, 0
      %p95 = por %p93, %p94
      %s97 = sadd.s32 %s96, 1
      %p100 = scmp.eq.s32.totalorder %s20, 1
      %p101 = scmp.ne.s32.totalorder %s96, %s98
      %p102 = scmp.eq.s32.totalorder %s20, 0
      %p103 = por %p101, %p102
      %p104 = scmp.ne.s32.totalorder %s96, %s98
      %p105 = scmp.eq.s32.totalorder %s25, 1
      %p106 = por %p104, %p105
      %p107 = scmp.ne.s32.totalorder %s98, %s99
      %p108 = scmp.eq.s32.totalorder %s25, 0
      %p109 = por %p107, %p108
      %p110 = scmp.ne.s32.totalorder %s98, %s99
      %p111 = scmp.eq.s32.totalorder %s26, 1
      %p112 = por %p110, %p111
      %p114 = scmp.ne.s32.totalorder %s99, %s113
      %p115 = scmp.eq.s32.totalorder %s26, 0
      %p116 = por %p114, %p115
      %s118 = sadd.s32 %s117, 1
      %p121 = scmp.eq.s32.totalorder %s20, 1
      %p122 = scmp.ne.s32.totalorder %s117, %s119
      %p123 = scmp.eq.s32.totalorder %s20, 0
      %p124 = por %p122, %p123
      %p125 = scmp.ne.s32.totalorder %s117, %s119
      %p126 = scmp.eq.s32.totalorder %s25, 1
      %p127 = por %p125, %p126
      %p128 = scmp.ne.s32.totalorder %s119, %s120
      %p129 = scmp.eq.s32.totalorder %s25, 0
      %p130 = por %p128, %p129
      %p131 = scmp.ne.s32.totalorder %s119, %s120
      %p132 = scmp.eq.s32.totalorder %s26, 1
      %p133 = por %p131, %p132
      %p135 = scmp.ne.s32.totalorder %s120, %s134
      %p136 = scmp.eq.s32.totalorder %s26, 0
      %p137 = por %p135, %p136
      %s138 = ssub.s32 %s20, %s27
      %p139 = scmp.eq.s32.totalorder %s138, 0
      %s141 = sadd.s32 %s140, 1
      %s142 = scalar_select %p139, %s140, %s141
      %p145 = pneg %p139
      %p146 = scmp.eq.s32.totalorder %s20, 1
      %p147 = por %p145, %p146
      %p148 = scmp.ne.s32.totalorder %s140, %s143
      %p149 = scmp.eq.s32.totalorder %s20, 0
      %p150 = por %p148, %p149
      %p151 = scmp.ne.s32.totalorder %s140, %s143
      %p152 = scmp.eq.s32.totalorder %s25, 1
      %p153 = por %p151, %p152
      %p154 = scmp.ne.s32.totalorder %s143, %s144
      %p155 = scmp.eq.s32.totalorder %s25, 0
      %p156 = por %p154, %p155
      %p157 = scmp.ne.s32.totalorder %s143, %s144
      %p158 = scmp.eq.s32.totalorder %s26, 1
      %p159 = por %p157, %p158
      %p161 = scmp.ne.s32.totalorder %s144, %s160
      %p162 = scmp.eq.s32.totalorder %s26, 0
      %p163 = por %p161, %p162
      %p164 = scmp.le.s32.totalorder 1, %s20
      %p165 = scmp.lt.s32.totalorder %s20, 3
      %p166 = pnand %p164, %p165
      %p167 = pneg %p166
      // Predicated region
      $region9: #{tpu_custom_call.1} parent=5 // pred_check
        _
      $region10: #{tpu_custom_call.1} parent=5 // pred_check_branch
        %169 = sbr.rel (%p166) target = $region12
      $region11: #{tpu_custom_call.1} parent=5 // pred_region
        %s170 = ssub.s32 %s20, 1
        // Predicated region
        $region13: #{tpu_custom_call.1} parent=11 // pred_check
          %p171 = pneg %p67
        $region14: #{tpu_custom_call.1} parent=11 // pred_check_branch
          %173 = sbr.rel (%p171) target = $region16
        $region15: #{tpu_custom_call.1} parent=11 // pred_region
          %s175 = ssub.s32 16384, 16384
          %176 = vsyncadd [#allocation8], %s175
          %s177 = sshll.u32 [#allocation7], 4
          %s178 = int_to_ptr.vmem [resolvable:$true] %s177
          %183 = dma.hbm_to_vmem [thread:$0]  %s2, 16384, %s178, [#allocation8], 1024, 1024, 64
        $region16: #{tpu_custom_call.1} parent=11 // pred_fallthru
          _
        // Predicated region
        $region17: #{tpu_custom_call.1} parent=11 // pred_check
          %p184 = pneg %p88
        $region18: #{tpu_custom_call.1} parent=11 // pred_check_branch
          %186 = sbr.rel (%p184) target = $region20
        $region19: #{tpu_custom_call.1} parent=11 // pred_region
          _
        $region20: #{tpu_custom_call.1} parent=11 // pred_fallthru
          _
        // Predicated region
        $region21: #{tpu_custom_call.1} parent=11 // pred_check
          %p187 = pneg %p109
        $region22: #{tpu_custom_call.1} parent=11 // pred_check_branch
          %189 = sbr.rel (%p187) target = $region24
        $region23: #{tpu_custom_call.1} parent=11 // pred_region
          %s191 = ssub.s32 16384, 16384
          %192 = vsyncadd [#allocation8], %s191
          %s193 = sshll.u32 [#allocation9], 4
          %s194 = int_to_ptr.vmem [resolvable:$true] %s193
          %199 = dma.hbm_to_vmem [thread:$0]  %s4, 16384, %s194, [#allocation8], 128, 128, 8
        $region24: #{tpu_custom_call.1} parent=11 // pred_fallthru
          _
        // Predicated region
        $region25: #{tpu_custom_call.1} parent=11 // pred_check
          %p200 = pneg %p130
        $region26: #{tpu_custom_call.1} parent=11 // pred_check_branch
          %202 = sbr.rel (%p200) target = $region28
        $region27: #{tpu_custom_call.1} parent=11 // pred_region
          _
        $region28: #{tpu_custom_call.1} parent=11 // pred_fallthru
          _
      $region12: #{tpu_custom_call.1} parent=5 // pred_fallthru
        _
      %p203 = scmp.lt.s32.totalorder %s20, 2
      // Predicated region
      $region29: #{tpu_custom_call.1} parent=5 // pred_check
        %p204 = pneg %p203
      $region30: #{tpu_custom_call.1} parent=5 // pred_check_branch
        %206 = sbr.rel (%p204) target = $region32
      $region31: #{tpu_custom_call.1} parent=5 // pred_region
        // Predicated region
        $region33: #{tpu_custom_call.1} parent=31 // pred_check
          %p207 = pneg %p40
        $region34: #{tpu_custom_call.1} parent=31 // pred_check_branch
          %209 = sbr.rel (%p207) target = $region36
        $region35: #{tpu_custom_call.1} parent=31 // pred_region
          %s210 = sand.u32 %s30, 1
          %s211 = scalar_lea.sflag [#allocation5], %s210
          %s212 = sand.u32 %s30, 1
          %s213 = smul.addr %s212, 8
          %s214 = scalar_lea.vmem [#allocation4], %s213
          %s216 = ssub.s32 128, 128
          %217 = vsyncadd %s211, %s216
          %s218 = smul.addr %s20, 128
          %s219 = scalar_lea.hbm %s1, %s218
          %s221 = sshll.u32 %s214, 4
          %s222 = int_to_ptr.vmem [resolvable:$true] %s221
          %224 = dma.hbm_to_vmem [thread:$0]  %s219, 128, %s222, %s211
        $region36: #{tpu_custom_call.1} parent=31 // pred_fallthru
          _
      $region32: #{tpu_custom_call.1} parent=5 // pred_fallthru
        _
      %p225 = scmp.le.s32.totalorder 1, %s20
      %p226 = scmp.lt.s32.totalorder %s20, 3
      %p227 = pnand %p225, %p226
      %p228 = pneg %p227
      // Predicated region
      $region37: #{tpu_custom_call.1} parent=5 // pred_check
        _
      $region38: #{tpu_custom_call.1} parent=5 // pred_check_branch
        %230 = sbr.rel (%p227) target = $region40
      $region39: #{tpu_custom_call.1} parent=5 // pred_region
        %s231 = ssub.s32 %s20, 1
        %s232 = sand.u32 %s33, 1
        %s233 = scalar_lea.sflag [#allocation5], %s232
        %s234 = sand.u32 %s33, 1
        %s235 = smul.addr %s234, 8
        %s236 = scalar_lea.vmem [#allocation4], %s235
        // Predicated region
        $region41: #{tpu_custom_call.1} parent=39 // pred_check
          %p237 = pneg %p46
        $region42: #{tpu_custom_call.1} parent=39 // pred_check_branch
          %239 = sbr.rel (%p237) target = $region44
        $region43: #{tpu_custom_call.1} parent=39 // pred_region
          %240 = dma.done %s233, 128
        $region44: #{tpu_custom_call.1} parent=39 // pred_fallthru
          _
        // Predicated region
        $region45: #{tpu_custom_call.1} parent=39 // pred_check
          %p241 = pneg %p67
        $region46: #{tpu_custom_call.1} parent=39 // pred_check_branch
          %243 = sbr.rel (%p241) target = $region48
        $region47: #{tpu_custom_call.1} parent=39 // pred_region
          %244 = dma.done [#allocation8], 16384
        $region48: #{tpu_custom_call.1} parent=39 // pred_fallthru
          _
        // Predicated region
        $region49: #{tpu_custom_call.1} parent=39 // pred_check
          %p245 = pneg %p109
        $region50: #{tpu_custom_call.1} parent=39 // pred_check_branch
          %247 = sbr.rel (%p245) target = $region52
        $region51: #{tpu_custom_call.1} parent=39 // pred_region
          %248 = dma.done [#allocation8], 16384
        $region52: #{tpu_custom_call.1} parent=39 // pred_fallthru
          _
        %s249 = sand.u32 %s33, 1
        %s250 = scalar_lea.sflag [#allocation5], %s249
        %s251 = sand.u32 %s33, 1
        %s252 = smul.addr %s251, 8
        %s253 = scalar_lea.vmem [#allocation4], %s252
        %p254 = pneg %p46
        %p255 = pneg %p43
        %p256 = pneg %p67
        %p257 = pneg %p64
        %p258 = pneg %p88
        %p259 = pneg %p85
        %p260 = pneg %p109
        %p261 = pneg %p106
        %p262 = pneg %p130
        %p263 = pneg %p127
        %p264 = pneg %p156
        %p265 = pneg %p153
        %s266 = sand.u32 %s143, 1
        %s267 = scalar_lea.sflag [#allocation6], %s266
        %s268 = sand.u32 %s143, 1
        %s269 = smul.addr %s268, 8
        %s270 = scalar_lea.vmem [#allocation10], %s269
        %v271 = vld [vmem:[%s236] sm:$0xff]
        %v272 = vld [vmem:[#allocation7] sm:$0xff]
        %v273 = vld [vmem:[#allocation7 + $0x8] sm:$0xff]
        %v274 = vld [vmem:[#allocation7 + $0x10] sm:$0xff]
        %v275 = vld [vmem:[#allocation7 + $0x18] sm:$0xff]
        %v276 = vld [vmem:[#allocation7 + $0x20] sm:$0xff]
        %v277 = vld [vmem:[#allocation7 + $0x28] sm:$0xff]
        %v278 = vld [vmem:[#allocation7 + $0x30] sm:$0xff]
        %v279 = vld [vmem:[#allocation7 + $0x38] sm:$0xff]
        %v280 = vld [vmem:[#allocation7 + $0x40] sm:$0xff]
        %v281 = vld [vmem:[#allocation7 + $0x48] sm:$0xff]
        %v282 = vld [vmem:[#allocation7 + $0x50] sm:$0xff]
        %v283 = vld [vmem:[#allocation7 + $0x58] sm:$0xff]
        %v284 = vld [vmem:[#allocation7 + $0x60] sm:$0xff]
        %v285 = vld [vmem:[#allocation7 + $0x68] sm:$0xff]
        %v286 = vld [vmem:[#allocation7 + $0x70] sm:$0xff]
        %v287 = vld [vmem:[#allocation7 + $0x78] sm:$0xff]
        %v288 = vld [vmem:[#allocation7 + $0x80] sm:$0xff]
        %v289 = vld [vmem:[#allocation7 + $0x88] sm:$0xff]
        %v290 = vld [vmem:[#allocation7 + $0x90] sm:$0xff]
        %v291 = vld [vmem:[#allocation7 + $0x98] sm:$0xff]
        %v292 = vld [vmem:[#allocation7 + $0xa0] sm:$0xff]
        %v293 = vld [vmem:[#allocation7 + $0xa8] sm:$0xff]
        %v294 = vld [vmem:[#allocation7 + $0xb0] sm:$0xff]
        %v295 = vld [vmem:[#allocation7 + $0xb8] sm:$0xff]
        %v296 = vld [vmem:[#allocation7 + $0xc0] sm:$0xff]
        %v297 = vld [vmem:[#allocation7 + $0xc8] sm:$0xff]
        %v298 = vld [vmem:[#allocation7 + $0xd0] sm:$0xff]
        %v299 = vld [vmem:[#allocation7 + $0xd8] sm:$0xff]
        %v300 = vld [vmem:[#allocation7 + $0xe0] sm:$0xff]
        %v301 = vld [vmem:[#allocation7 + $0xe8] sm:$0xff]
        %v302 = vld [vmem:[#allocation7 + $0xf0] sm:$0xff]
        %v303 = vld [vmem:[#allocation7 + $0xf8] sm:$0xff]
        %v304 = vld [vmem:[#allocation7 + $0x100] sm:$0xff]
        %v305 = vld [vmem:[#allocation7 + $0x108] sm:$0xff]
        %v306 = vld [vmem:[#allocation7 + $0x110] sm:$0xff]
        %v307 = vld [vmem:[#allocation7 + $0x118] sm:$0xff]
        %v308 = vld [vmem:[#allocation7 + $0x120] sm:$0xff]
        %v309 = vld [vmem:[#allocation7 + $0x128] sm:$0xff]
        %v310 = vld [vmem:[#allocation7 + $0x130] sm:$0xff]
        %v311 = vld [vmem:[#allocation7 + $0x138] sm:$0xff]
        %v312 = vld [vmem:[#allocation7 + $0x140] sm:$0xff]
        %v313 = vld [vmem:[#allocation7 + $0x148] sm:$0xff]
        %v314 = vld [vmem:[#allocation7 + $0x150] sm:$0xff]
        %v315 = vld [vmem:[#allocation7 + $0x158] sm:$0xff]
        %v316 = vld [vmem:[#allocation7 + $0x160] sm:$0xff]
        %v317 = vld [vmem:[#allocation7 + $0x168] sm:$0xff]
        %v318 = vld [vmem:[#allocation7 + $0x170] sm:$0xff]
        %v319 = vld [vmem:[#allocation7 + $0x178] sm:$0xff]
        %v320 = vld [vmem:[#allocation7 + $0x180] sm:$0xff]
        %v321 = vld [vmem:[#allocation7 + $0x188] sm:$0xff]
        %v322 = vld [vmem:[#allocation7 + $0x190] sm:$0xff]
        %v323 = vld [vmem:[#allocation7 + $0x198] sm:$0xff]
        %v324 = vld [vmem:[#allocation7 + $0x1a0] sm:$0xff]
        %v325 = vld [vmem:[#allocation7 + $0x1a8] sm:$0xff]
        %v326 = vld [vmem:[#allocation7 + $0x1b0] sm:$0xff]
        %v327 = vld [vmem:[#allocation7 + $0x1b8] sm:$0xff]
        %v328 = vld [vmem:[#allocation7 + $0x1c0] sm:$0xff]
        %v329 = vld [vmem:[#allocation7 + $0x1c8] sm:$0xff]
        %v330 = vld [vmem:[#allocation7 + $0x1d0] sm:$0xff]
        %v331 = vld [vmem:[#allocation7 + $0x1d8] sm:$0xff]
        %v332 = vld [vmem:[#allocation7 + $0x1e0] sm:$0xff]
        %v333 = vld [vmem:[#allocation7 + $0x1e8] sm:$0xff]
        %v334 = vld [vmem:[#allocation7 + $0x1f0] sm:$0xff]
        %v335 = vld [vmem:[#allocation7 + $0x1f8] sm:$0xff]
        %v336 = vld [vmem:[#allocation7 + $0x200] sm:$0xff]
        %v337 = vld [vmem:[#allocation7 + $0x208] sm:$0xff]
        %v338 = vld [vmem:[#allocation7 + $0x210] sm:$0xff]
        %v339 = vld [vmem:[#allocation7 + $0x218] sm:$0xff]
        %v340 = vld [vmem:[#allocation7 + $0x220] sm:$0xff]
        %v341 = vld [vmem:[#allocation7 + $0x228] sm:$0xff]
        %v342 = vld [vmem:[#allocation7 + $0x230] sm:$0xff]
        %v343 = vld [vmem:[#allocation7 + $0x238] sm:$0xff]
        %v344 = vld [vmem:[#allocation7 + $0x240] sm:$0xff]
        %v345 = vld [vmem:[#allocation7 + $0x248] sm:$0xff]
        %v346 = vld [vmem:[#allocation7 + $0x250] sm:$0xff]
        %v347 = vld [vmem:[#allocation7 + $0x258] sm:$0xff]
        %v348 = vld [vmem:[#allocation7 + $0x260] sm:$0xff]
        %v349 = vld [vmem:[#allocation7 + $0x268] sm:$0xff]
        %v350 = vld [vmem:[#allocation7 + $0x270] sm:$0xff]
        %v351 = vld [vmem:[#allocation7 + $0x278] sm:$0xff]
        %v352 = vld [vmem:[#allocation7 + $0x280] sm:$0xff]
        %v353 = vld [vmem:[#allocation7 + $0x288] sm:$0xff]
        %v354 = vld [vmem:[#allocation7 + $0x290] sm:$0xff]
        %v355 = vld [vmem:[#allocation7 + $0x298] sm:$0xff]
        %v356 = vld [vmem:[#allocation7 + $0x2a0] sm:$0xff]
        %v357 = vld [vmem:[#allocation7 + $0x2a8] sm:$0xff]
        %v358 = vld [vmem:[#allocation7 + $0x2b0] sm:$0xff]
        %v359 = vld [vmem:[#allocation7 + $0x2b8] sm:$0xff]
        %v360 = vld [vmem:[#allocation7 + $0x2c0] sm:$0xff]
        %v361 = vld [vmem:[#allocation7 + $0x2c8] sm:$0xff]
        %v362 = vld [vmem:[#allocation7 + $0x2d0] sm:$0xff]
        %v363 = vld [vmem:[#allocation7 + $0x2d8] sm:$0xff]
        %v364 = vld [vmem:[#allocation7 + $0x2e0] sm:$0xff]
        %v365 = vld [vmem:[#allocation7 + $0x2e8] sm:$0xff]
        %v366 = vld [vmem:[#allocation7 + $0x2f0] sm:$0xff]
        %v367 = vld [vmem:[#allocation7 + $0x2f8] sm:$0xff]
        %v368 = vld [vmem:[#allocation7 + $0x300] sm:$0xff]
        %v369 = vld [vmem:[#allocation7 + $0x308] sm:$0xff]
        %v370 = vld [vmem:[#allocation7 + $0x310] sm:$0xff]
        %v371 = vld [vmem:[#allocation7 + $0x318] sm:$0xff]
        %v372 = vld [vmem:[#allocation7 + $0x320] sm:$0xff]
        %v373 = vld [vmem:[#allocation7 + $0x328] sm:$0xff]
        %v374 = vld [vmem:[#allocation7 + $0x330] sm:$0xff]
        %v375 = vld [vmem:[#allocation7 + $0x338] sm:$0xff]
        %v376 = vld [vmem:[#allocation7 + $0x340] sm:$0xff]
        %v377 = vld [vmem:[#allocation7 + $0x348] sm:$0xff]
        %v378 = vld [vmem:[#allocation7 + $0x350] sm:$0xff]
        %v379 = vld [vmem:[#allocation7 + $0x358] sm:$0xff]
        %v380 = vld [vmem:[#allocation7 + $0x360] sm:$0xff]
        %v381 = vld [vmem:[#allocation7 + $0x368] sm:$0xff]
        %v382 = vld [vmem:[#allocation7 + $0x370] sm:$0xff]
        %v383 = vld [vmem:[#allocation7 + $0x378] sm:$0xff]
        %v384 = vld [vmem:[#allocation7 + $0x380] sm:$0xff]
        %v385 = vld [vmem:[#allocation7 + $0x388] sm:$0xff]
        %v386 = vld [vmem:[#allocation7 + $0x390] sm:$0xff]
        %v387 = vld [vmem:[#allocation7 + $0x398] sm:$0xff]
        %v388 = vld [vmem:[#allocation7 + $0x3a0] sm:$0xff]
        %v389 = vld [vmem:[#allocation7 + $0x3a8] sm:$0xff]
        %v390 = vld [vmem:[#allocation7 + $0x3b0] sm:$0xff]
        %v391 = vld [vmem:[#allocation7 + $0x3b8] sm:$0xff]
        %v392 = vld [vmem:[#allocation7 + $0x3c0] sm:$0xff]
        %v393 = vld [vmem:[#allocation7 + $0x3c8] sm:$0xff]
        %v394 = vld [vmem:[#allocation7 + $0x3d0] sm:$0xff]
        %v395 = vld [vmem:[#allocation7 + $0x3d8] sm:$0xff]
        %v396 = vld [vmem:[#allocation7 + $0x3e0] sm:$0xff]
        %v397 = vld [vmem:[#allocation7 + $0x3e8] sm:$0xff]
        %v398 = vld [vmem:[#allocation7 + $0x3f0] sm:$0xff]
        %v399 = vld [vmem:[#allocation7 + $0x3f8] sm:$0xff]
        %v400 = vld [vmem:[%s3] sm:$0xff]
        %v402 = vlaneseq
        %v403 = vshrl.u32 %v402, 7
        %v404 = vsub.s32 0, %v403
        %v405 = vrot.slane %v400, %v404
        %v406 = vlaneseq
        %v407 = vshrl.u32 %v406, 7
        %v408 = vsub.s32 1, %v407
        %v409 = vrot.slane %v400, %v408
        %v410 = vlaneseq
        %v411 = vshrl.u32 %v410, 7
        %v412 = vsub.s32 2, %v411
        %v413 = vrot.slane %v400, %v412
        %v414 = vlaneseq
        %v415 = vshrl.u32 %v414, 7
        %v416 = vsub.s32 3, %v415
        %v417 = vrot.slane %v400, %v416
        %v418 = vlaneseq
        %v419 = vshrl.u32 %v418, 7
        %v420 = vsub.s32 4, %v419
        %v421 = vrot.slane %v400, %v420
        %v422 = vlaneseq
        %v423 = vshrl.u32 %v422, 7
        %v424 = vsub.s32 5, %v423
        %v425 = vrot.slane %v400, %v424
        %v426 = vlaneseq
        %v427 = vshrl.u32 %v426, 7
        %v428 = vsub.s32 6, %v427
        %v429 = vrot.slane %v400, %v428
        %v430 = vlaneseq
        %v431 = vshrl.u32 %v430, 7
        %v432 = vsub.s32 7, %v431
        %v433 = vrot.slane %v400, %v432
        %442 = vmatprep.subr.mxu0 %v273
        %443 = vmatpush1.msra.mxu0 %v272
        %444 = vmatprep.subr.mxu0 %v281
        %445 = vmatpush1.msra.mxu0 %v280
        %446 = vmatprep.subr.mxu0 %v289
        %447 = vmatpush1.msra.mxu0 %v288
        %448 = vmatprep.subr.mxu0 %v297
        %449 = vmatpush1.msra.mxu0 %v296
        %450 = vmatprep.subr.mxu0 %v305
        %451 = vmatpush1.msra.mxu0 %v304
        %452 = vmatprep.subr.mxu0 %v313
        %453 = vmatpush1.msra.mxu0 %v312
        %454 = vmatprep.subr.mxu0 %v321
        %455 = vmatpush1.msra.mxu0 %v320
        %456 = vmatprep.subr.mxu0 %v329
        %457 = vmatpush1.msra.mxu0 %v328
        %458 = vmatprep.subr.mxu0 %v337
        %459 = vmatpush1.msra.mxu0 %v336
        %460 = vmatprep.subr.mxu0 %v345
        %461 = vmatpush1.msra.mxu0 %v344
        %462 = vmatprep.subr.mxu0 %v353
        %463 = vmatpush1.msra.mxu0 %v352
        %464 = vmatprep.subr.mxu0 %v361
        %465 = vmatpush1.msra.mxu0 %v360
        %466 = vmatprep.subr.mxu0 %v369
        %467 = vmatpush1.msra.mxu0 %v368
        %468 = vmatprep.subr.mxu0 %v377
        %469 = vmatpush1.msra.mxu0 %v376
        %470 = vmatprep.subr.mxu0 %v385
        %471 = vmatpush1.msra.mxu0 %v384
        %472 = vmatprep.subr.mxu0 %v393
        %473 = vmatpush1.msra.mxu0 %v392
        %474 = vmatprep.subr.mxu0 0.0
        %475 = vmatpush1.msra.mxu0 0.0
        %476 = vmatprep.subr.mxu0 0.0
        %477 = vmatpush1.msra.mxu0 0.0
        %478 = vmatprep.subr.mxu0 0.0
        %479 = vmatpush1.msra.mxu0 0.0
        %480 = vmatprep.subr.mxu0 0.0
        %481 = vmatpush1.msra.mxu0 0.0
        %482 = vmatprep.subr.mxu0 0.0
        %483 = vmatpush1.msra.mxu0 0.0
        %484 = vmatprep.subr.mxu0 0.0
        %485 = vmatpush1.msra.mxu0 0.0
        %486 = vmatprep.subr.mxu0 0.0
        %487 = vmatpush1.msra.mxu0 0.0
        %488 = vmatprep.subr.mxu0 0.0
        %489 = vmatpush1.msra.mxu0 0.0
        %490 = vmatprep.subr.mxu0 0.0
        %491 = vmatpush1.msra.mxu0 0.0
        %492 = vmatprep.subr.mxu0 0.0
        %493 = vmatpush1.msra.mxu0 0.0
        %494 = vmatprep.subr.mxu0 0.0
        %495 = vmatpush1.msra.mxu0 0.0
        %496 = vmatprep.subr.mxu0 0.0
        %497 = vmatpush1.msra.mxu0 0.0
        %498 = vmatprep.subr.mxu0 0.0
        %499 = vmatpush1.msra.mxu0 0.0
        %500 = vmatprep.subr.mxu0 0.0
        %501 = vmatpush1.msra.mxu0 0.0
        %502 = vmatprep.subr.mxu0 0.0
        %503 = vmatpush1.msra.mxu0 0.0
        %504 = vmatprep.subr.mxu0 0.0
        %505 = vmatpush1.msra.mxu0 0.0
        %506 = vmatprep.mubr.f32.mxu0 0.0
        %507 = vmatmul.mubr.f32.gmra.mrb[0].mxu0 %v271
        %v508 = vpop.f32.mrb[0].mxu0
        %v509 = vadd.f32 %v405, %v508
        %v510 = vpop.f32.mrb[0].mxu0
        %v511 = vadd.f32 %v409, %v510
        %512 = vdwg.mxu0
        %513 = vmatprep.subr.mxu0 %v275
        %514 = vmatpush1.msra.mxu0 %v274
        %515 = vmatprep.subr.mxu0 %v283
        %516 = vmatpush1.msra.mxu0 %v282
        %517 = vmatprep.subr.mxu0 %v291
        %518 = vmatpush1.msra.mxu0 %v290
        %519 = vmatprep.subr.mxu0 %v299
        %520 = vmatpush1.msra.mxu0 %v298
        %521 = vmatprep.subr.mxu0 %v307
        %522 = vmatpush1.msra.mxu0 %v306
        %523 = vmatprep.subr.mxu0 %v315
        %524 = vmatpush1.msra.mxu0 %v314
        %525 = vmatprep.subr.mxu0 %v323
        %526 = vmatpush1.msra.mxu0 %v322
        %527 = vmatprep.subr.mxu0 %v331
        %528 = vmatpush1.msra.mxu0 %v330
        %529 = vmatprep.subr.mxu0 %v339
        %530 = vmatpush1.msra.mxu0 %v338
        %531 = vmatprep.subr.mxu0 %v347
        %532 = vmatpush1.msra.mxu0 %v346
        %533 = vmatprep.subr.mxu0 %v355
        %534 = vmatpush1.msra.mxu0 %v354
        %535 = vmatprep.subr.mxu0 %v363
        %536 = vmatpush1.msra.mxu0 %v362
        %537 = vmatprep.subr.mxu0 %v371
        %538 = vmatpush1.msra.mxu0 %v370
        %539 = vmatprep.subr.mxu0 %v379
        %540 = vmatpush1.msra.mxu0 %v378
        %541 = vmatprep.subr.mxu0 %v387
        %542 = vmatpush1.msra.mxu0 %v386
        %543 = vmatprep.subr.mxu0 %v395
        %544 = vmatpush1.msra.mxu0 %v394
        %545 = vmatprep.subr.mxu0 0.0
        %546 = vmatpush1.msra.mxu0 0.0
        %547 = vmatprep.subr.mxu0 0.0
        %548 = vmatpush1.msra.mxu0 0.0
        %549 = vmatprep.subr.mxu0 0.0
        %550 = vmatpush1.msra.mxu0 0.0
        %551 = vmatprep.subr.mxu0 0.0
        %552 = vmatpush1.msra.mxu0 0.0
        %553 = vmatprep.subr.mxu0 0.0
        %554 = vmatpush1.msra.mxu0 0.0
        %555 = vmatprep.subr.mxu0 0.0
        %556 = vmatpush1.msra.mxu0 0.0
        %557 = vmatprep.subr.mxu0 0.0
        %558 = vmatpush1.msra.mxu0 0.0
        %559 = vmatprep.subr.mxu0 0.0
        %560 = vmatpush1.msra.mxu0 0.0
        %561 = vmatprep.subr.mxu0 0.0
        %562 = vmatpush1.msra.mxu0 0.0
        %563 = vmatprep.subr.mxu0 0.0
        %564 = vmatpush1.msra.mxu0 0.0
        %565 = vmatprep.subr.mxu0 0.0
        %566 = vmatpush1.msra.mxu0 0.0
        %567 = vmatprep.subr.mxu0 0.0
        %568 = vmatpush1.msra.mxu0 0.0
        %569 = vmatprep.subr.mxu0 0.0
        %570 = vmatpush1.msra.mxu0 0.0
        %571 = vmatprep.subr.mxu0 0.0
        %572 = vmatpush1.msra.mxu0 0.0
        %573 = vmatprep.subr.mxu0 0.0
        %574 = vmatpush1.msra.mxu0 0.0
        %575 = vmatprep.subr.mxu0 0.0
        %576 = vmatpush1.msra.mxu0 0.0
        %577 = vmatprep.mubr.f32.mxu0 0.0
        %578 = vmatmul.mubr.f32.gmra.mrb[0].mxu0 %v271
        %v579 = vpop.f32.mrb[0].mxu0
        %v580 = vadd.f32 %v413, %v579
        %v581 = vpop.f32.mrb[0].mxu0
        %v582 = vadd.f32 %v417, %v581
        %583 = vdwg.mxu0
        %584 = vmatprep.subr.mxu0 %v277
        %585 = vmatpush1.msra.mxu0 %v276
        %586 = vmatprep.subr.mxu0 %v285
        %587 = vmatpush1.msra.mxu0 %v284
        %588 = vmatprep.subr.mxu0 %v293
        %589 = vmatpush1.msra.mxu0 %v292
        %590 = vmatprep.subr.mxu0 %v301
        %591 = vmatpush1.msra.mxu0 %v300
        %592 = vmatprep.subr.mxu0 %v309
        %593 = vmatpush1.msra.mxu0 %v308
        %594 = vmatprep.subr.mxu0 %v317
        %595 = vmatpush1.msra.mxu0 %v316
        %596 = vmatprep.subr.mxu0 %v325
        %597 = vmatpush1.msra.mxu0 %v324
        %598 = vmatprep.subr.mxu0 %v333
        %599 = vmatpush1.msra.mxu0 %v332
        %600 = vmatprep.subr.mxu0 %v341
        %601 = vmatpush1.msra.mxu0 %v340
        %602 = vmatprep.subr.mxu0 %v349
        %603 = vmatpush1.msra.mxu0 %v348
        %604 = vmatprep.subr.mxu0 %v357
        %605 = vmatpush1.msra.mxu0 %v356
        %606 = vmatprep.subr.mxu0 %v365
        %607 = vmatpush1.msra.mxu0 %v364
        %608 = vmatprep.subr.mxu0 %v373
        %609 = vmatpush1.msra.mxu0 %v372
        %610 = vmatprep.subr.mxu0 %v381
        %611 = vmatpush1.msra.mxu0 %v380
        %612 = vmatprep.subr.mxu0 %v389
        %613 = vmatpush1.msra.mxu0 %v388
        %614 = vmatprep.subr.mxu0 %v397
        %615 = vmatpush1.msra.mxu0 %v396
        %616 = vmatprep.subr.mxu0 0.0
        %617 = vmatpush1.msra.mxu0 0.0
        %618 = vmatprep.subr.mxu0 0.0
        %619 = vmatpush1.msra.mxu0 0.0
        %620 = vmatprep.subr.mxu0 0.0
        %621 = vmatpush1.msra.mxu0 0.0
        %622 = vmatprep.subr.mxu0 0.0
        %623 = vmatpush1.msra.mxu0 0.0
        %624 = vmatprep.subr.mxu0 0.0
        %625 = vmatpush1.msra.mxu0 0.0
        %626 = vmatprep.subr.mxu0 0.0
        %627 = vmatpush1.msra.mxu0 0.0
        %628 = vmatprep.subr.mxu0 0.0
        %629 = vmatpush1.msra.mxu0 0.0
        %630 = vmatprep.subr.mxu0 0.0
        %631 = vmatpush1.msra.mxu0 0.0
        %632 = vmatprep.subr.mxu0 0.0
        %633 = vmatpush1.msra.mxu0 0.0
        %634 = vmatprep.subr.mxu0 0.0
        %635 = vmatpush1.msra.mxu0 0.0
        %636 = vmatprep.subr.mxu0 0.0
        %637 = vmatpush1.msra.mxu0 0.0
        %638 = vmatprep.subr.mxu0 0.0
        %639 = vmatpush1.msra.mxu0 0.0
        %640 = vmatprep.subr.mxu0 0.0
        %641 = vmatpush1.msra.mxu0 0.0
        %642 = vmatprep.subr.mxu0 0.0
        %643 = vmatpush1.msra.mxu0 0.0
        %644 = vmatprep.subr.mxu0 0.0
        %645 = vmatpush1.msra.mxu0 0.0
        %646 = vmatprep.subr.mxu0 0.0
        %647 = vmatpush1.msra.mxu0 0.0
        %648 = vmatprep.mubr.f32.mxu0 0.0
        %649 = vmatmul.mubr.f32.gmra.mrb[0].mxu0 %v271
        %v650 = vpop.f32.mrb[0].mxu0
        %v651 = vadd.f32 %v421, %v650
        %v652 = vpop.f32.mrb[0].mxu0
        %v653 = vadd.f32 %v425, %v652
        %654 = vdwg.mxu0
        %655 = vmatprep.subr.mxu0 %v279
        %656 = vmatpush1.msra.mxu0 %v278
        %657 = vmatprep.subr.mxu0 %v287
        %658 = vmatpush1.msra.mxu0 %v286
        %659 = vmatprep.subr.mxu0 %v295
        %660 = vmatpush1.msra.mxu0 %v294
        %661 = vmatprep.subr.mxu0 %v303
        %662 = vmatpush1.msra.mxu0 %v302
        %663 = vmatprep.subr.mxu0 %v311
        %664 = vmatpush1.msra.mxu0 %v310
        %665 = vmatprep.subr.mxu0 %v319
        %666 = vmatpush1.msra.mxu0 %v318
        %667 = vmatprep.subr.mxu0 %v327
        %668 = vmatpush1.msra.mxu0 %v326
        %669 = vmatprep.subr.mxu0 %v335
        %670 = vmatpush1.msra.mxu0 %v334
        %671 = vmatprep.subr.mxu0 %v343
        %672 = vmatpush1.msra.mxu0 %v342
        %673 = vmatprep.subr.mxu0 %v351
        %674 = vmatpush1.msra.mxu0 %v350
        %675 = vmatprep.subr.mxu0 %v359
        %676 = vmatpush1.msra.mxu0 %v358
        %677 = vmatprep.subr.mxu0 %v367
        %678 = vmatpush1.msra.mxu0 %v366
        %679 = vmatprep.subr.mxu0 %v375
        %680 = vmatpush1.msra.mxu0 %v374
        %681 = vmatprep.subr.mxu0 %v383
        %682 = vmatpush1.msra.mxu0 %v382
        %683 = vmatprep.subr.mxu0 %v391
        %684 = vmatpush1.msra.mxu0 %v390
        %685 = vmatprep.subr.mxu0 %v399
        %686 = vmatpush1.msra.mxu0 %v398
        %687 = vmatprep.subr.mxu0 0.0
        %688 = vmatpush1.msra.mxu0 0.0
        %689 = vmatprep.subr.mxu0 0.0
        %690 = vmatpush1.msra.mxu0 0.0
        %691 = vmatprep.subr.mxu0 0.0
        %692 = vmatpush1.msra.mxu0 0.0
        %693 = vmatprep.subr.mxu0 0.0
        %694 = vmatpush1.msra.mxu0 0.0
        %695 = vmatprep.subr.mxu0 0.0
        %696 = vmatpush1.msra.mxu0 0.0
        %697 = vmatprep.subr.mxu0 0.0
        %698 = vmatpush1.msra.mxu0 0.0
        %699 = vmatprep.subr.mxu0 0.0
        %700 = vmatpush1.msra.mxu0 0.0
        %701 = vmatprep.subr.mxu0 0.0
        %702 = vmatpush1.msra.mxu0 0.0
        %703 = vmatprep.subr.mxu0 0.0
        %704 = vmatpush1.msra.mxu0 0.0
        %705 = vmatprep.subr.mxu0 0.0
        %706 = vmatpush1.msra.mxu0 0.0
        %707 = vmatprep.subr.mxu0 0.0
        %708 = vmatpush1.msra.mxu0 0.0
        %709 = vmatprep.subr.mxu0 0.0
        %710 = vmatpush1.msra.mxu0 0.0
        %711 = vmatprep.subr.mxu0 0.0
        %712 = vmatpush1.msra.mxu0 0.0
        %713 = vmatprep.subr.mxu0 0.0
        %714 = vmatpush1.msra.mxu0 0.0
        %715 = vmatprep.subr.mxu0 0.0
        %716 = vmatpush1.msra.mxu0 0.0
        %717 = vmatprep.subr.mxu0 0.0
        %718 = vmatpush1.msra.mxu0 0.0
        %719 = vmatprep.mubr.f32.mxu0 0.0
        %720 = vmatmul.mubr.f32.gmra.mrb[0].mxu0 %v271
        %v721 = vpop.f32.mrb[0].mxu0
        %v722 = vadd.f32 %v429, %v721
        %v723 = vpop.f32.mrb[0].mxu0
        %v724 = vadd.f32 %v433, %v723
        %725 = vdwg.mxu0
        %s726 = sld [smem:[#allocation3]]
        %vm727 = vcmp.ge.f32.partialorder %v509, 0.0
        %vm728 = vcmp.ge.f32.partialorder %v511, 0.0
        %vm729 = vcmp.ge.f32.partialorder %v580, 0.0
        %vm730 = vcmp.ge.f32.partialorder %v582, 0.0
        %vm731 = vcmp.ge.f32.partialorder %v651, 0.0
        %vm732 = vcmp.ge.f32.partialorder %v653, 0.0
        %vm733 = vcmp.ge.f32.partialorder %v722, 0.0
        %vm734 = vcmp.ge.f32.partialorder %v724, 0.0
        %v735 = vstv %s726
        %v736 = vmul.f32 %v735, %v509
        %v737 = vmul.f32 %v735, %v511
        %v738 = vmul.f32 %v735, %v580
        %v739 = vmul.f32 %v735, %v582
        %v740 = vmul.f32 %v735, %v651
        %v741 = vmul.f32 %v735, %v653
        %v742 = vmul.f32 %v735, %v722
        %v743 = vmul.f32 %v735, %v724
        %v744 = vsel %vm727, %v509, %v736
        %v745 = vsel %vm728, %v511, %v737
        %v746 = vsel %vm729, %v580, %v738
        %v747 = vsel %vm730, %v582, %v739
        %v748 = vsel %vm731, %v651, %v740
        %v749 = vsel %vm732, %v653, %v741
        %v750 = vsel %vm733, %v722, %v742
        %v751 = vsel %vm734, %v724, %v743
        %v752 = vld [vmem:[#allocation9] sm:$0xff]
        %v753 = vld [vmem:[#allocation9 + $0x8] sm:$0xff]
        %v754 = vld [vmem:[#allocation9 + $0x10] sm:$0xff]
        %v755 = vld [vmem:[#allocation9 + $0x18] sm:$0xff]
        %v756 = vld [vmem:[#allocation9 + $0x20] sm:$0xff]
        %v757 = vld [vmem:[#allocation9 + $0x28] sm:$0xff]
        %v758 = vld [vmem:[#allocation9 + $0x30] sm:$0xff]
        %v759 = vld [vmem:[#allocation9 + $0x38] sm:$0xff]
        %v760 = vld [vmem:[#allocation9 + $0x40] sm:$0xff]
        %v761 = vld [vmem:[#allocation9 + $0x48] sm:$0xff]
        %v762 = vld [vmem:[#allocation9 + $0x50] sm:$0xff]
        %v763 = vld [vmem:[#allocation9 + $0x58] sm:$0xff]
        %v764 = vld [vmem:[#allocation9 + $0x60] sm:$0xff]
        %v765 = vld [vmem:[#allocation9 + $0x68] sm:$0xff]
        %v766 = vld [vmem:[#allocation9 + $0x70] sm:$0xff]
        %v767 = vld [vmem:[#allocation9 + $0x78] sm:$0xff]
        %v768 = vld [vmem:[#allocation9 + $0x80] sm:$0xff]
        %v769 = vld [vmem:[#allocation9 + $0x88] sm:$0xff]
        %v770 = vld [vmem:[#allocation9 + $0x90] sm:$0xff]
        %v771 = vld [vmem:[#allocation9 + $0x98] sm:$0xff]
        %v772 = vld [vmem:[#allocation9 + $0xa0] sm:$0xff]
        %v773 = vld [vmem:[#allocation9 + $0xa8] sm:$0xff]
        %v774 = vld [vmem:[#allocation9 + $0xb0] sm:$0xff]
        %v775 = vld [vmem:[#allocation9 + $0xb8] sm:$0xff]
        %v776 = vld [vmem:[#allocation9 + $0xc0] sm:$0xff]
        %v777 = vld [vmem:[#allocation9 + $0xc8] sm:$0xff]
        %v778 = vld [vmem:[#allocation9 + $0xd0] sm:$0xff]
        %v779 = vld [vmem:[#allocation9 + $0xd8] sm:$0xff]
        %v780 = vld [vmem:[#allocation9 + $0xe0] sm:$0xff]
        %v781 = vld [vmem:[#allocation9 + $0xe8] sm:$0xff]
        %v782 = vld [vmem:[#allocation9 + $0xf0] sm:$0xff]
        %v783 = vld [vmem:[#allocation9 + $0xf8] sm:$0xff]
        %v784 = vld [vmem:[#allocation9 + $0x100] sm:$0xff]
        %v785 = vld [vmem:[#allocation9 + $0x108] sm:$0xff]
        %v786 = vld [vmem:[#allocation9 + $0x110] sm:$0xff]
        %v787 = vld [vmem:[#allocation9 + $0x118] sm:$0xff]
        %v788 = vld [vmem:[#allocation9 + $0x120] sm:$0xff]
        %v789 = vld [vmem:[#allocation9 + $0x128] sm:$0xff]
        %v790 = vld [vmem:[#allocation9 + $0x130] sm:$0xff]
        %v791 = vld [vmem:[#allocation9 + $0x138] sm:$0xff]
        %v792 = vld [vmem:[#allocation9 + $0x140] sm:$0xff]
        %v793 = vld [vmem:[#allocation9 + $0x148] sm:$0xff]
        %v794 = vld [vmem:[#allocation9 + $0x150] sm:$0xff]
        %v795 = vld [vmem:[#allocation9 + $0x158] sm:$0xff]
        %v796 = vld [vmem:[#allocation9 + $0x160] sm:$0xff]
        %v797 = vld [vmem:[#allocation9 + $0x168] sm:$0xff]
        %v798 = vld [vmem:[#allocation9 + $0x170] sm:$0xff]
        %v799 = vld [vmem:[#allocation9 + $0x178] sm:$0xff]
        %v800 = vld [vmem:[#allocation9 + $0x180] sm:$0xff]
        %v801 = vld [vmem:[#allocation9 + $0x188] sm:$0xff]
        %v802 = vld [vmem:[#allocation9 + $0x190] sm:$0xff]
        %v803 = vld [vmem:[#allocation9 + $0x198] sm:$0xff]
        %v804 = vld [vmem:[#allocation9 + $0x1a0] sm:$0xff]
        %v805 = vld [vmem:[#allocation9 + $0x1a8] sm:$0xff]
        %v806 = vld [vmem:[#allocation9 + $0x1b0] sm:$0xff]
        %v807 = vld [vmem:[#allocation9 + $0x1b8] sm:$0xff]
        %v808 = vld [vmem:[#allocation9 + $0x1c0] sm:$0xff]
        %v809 = vld [vmem:[#allocation9 + $0x1c8] sm:$0xff]
        %v810 = vld [vmem:[#allocation9 + $0x1d0] sm:$0xff]
        %v811 = vld [vmem:[#allocation9 + $0x1d8] sm:$0xff]
        %v812 = vld [vmem:[#allocation9 + $0x1e0] sm:$0xff]
        %v813 = vld [vmem:[#allocation9 + $0x1e8] sm:$0xff]
        %v814 = vld [vmem:[#allocation9 + $0x1f0] sm:$0xff]
        %v815 = vld [vmem:[#allocation9 + $0x1f8] sm:$0xff]
        %v816 = vld [vmem:[#allocation9 + $0x200] sm:$0xff]
        %v817 = vld [vmem:[#allocation9 + $0x208] sm:$0xff]
        %v818 = vld [vmem:[#allocation9 + $0x210] sm:$0xff]
        %v819 = vld [vmem:[#allocation9 + $0x218] sm:$0xff]
        %v820 = vld [vmem:[#allocation9 + $0x220] sm:$0xff]
        %v821 = vld [vmem:[#allocation9 + $0x228] sm:$0xff]
        %v822 = vld [vmem:[#allocation9 + $0x230] sm:$0xff]
        %v823 = vld [vmem:[#allocation9 + $0x238] sm:$0xff]
        %v824 = vld [vmem:[#allocation9 + $0x240] sm:$0xff]
        %v825 = vld [vmem:[#allocation9 + $0x248] sm:$0xff]
        %v826 = vld [vmem:[#allocation9 + $0x250] sm:$0xff]
        %v827 = vld [vmem:[#allocation9 + $0x258] sm:$0xff]
        %v828 = vld [vmem:[#allocation9 + $0x260] sm:$0xff]
        %v829 = vld [vmem:[#allocation9 + $0x268] sm:$0xff]
        %v830 = vld [vmem:[#allocation9 + $0x270] sm:$0xff]
        %v831 = vld [vmem:[#allocation9 + $0x278] sm:$0xff]
        %v832 = vld [vmem:[#allocation9 + $0x280] sm:$0xff]
        %v833 = vld [vmem:[#allocation9 + $0x288] sm:$0xff]
        %v834 = vld [vmem:[#allocation9 + $0x290] sm:$0xff]
        %v835 = vld [vmem:[#allocation9 + $0x298] sm:$0xff]
        %v836 = vld [vmem:[#allocation9 + $0x2a0] sm:$0xff]
        %v837 = vld [vmem:[#allocation9 + $0x2a8] sm:$0xff]
        %v838 = vld [vmem:[#allocation9 + $0x2b0] sm:$0xff]
        %v839 = vld [vmem:[#allocation9 + $0x2b8] sm:$0xff]
        %v840 = vld [vmem:[#allocation9 + $0x2c0] sm:$0xff]
        %v841 = vld [vmem:[#allocation9 + $0x2c8] sm:$0xff]
        %v842 = vld [vmem:[#allocation9 + $0x2d0] sm:$0xff]
        %v843 = vld [vmem:[#allocation9 + $0x2d8] sm:$0xff]
        %v844 = vld [vmem:[#allocation9 + $0x2e0] sm:$0xff]
        %v845 = vld [vmem:[#allocation9 + $0x2e8] sm:$0xff]
        %v846 = vld [vmem:[#allocation9 + $0x2f0] sm:$0xff]
        %v847 = vld [vmem:[#allocation9 + $0x2f8] sm:$0xff]
        %v848 = vld [vmem:[#allocation9 + $0x300] sm:$0xff]
        %v849 = vld [vmem:[#allocation9 + $0x308] sm:$0xff]
        %v850 = vld [vmem:[#allocation9 + $0x310] sm:$0xff]
        %v851 = vld [vmem:[#allocation9 + $0x318] sm:$0xff]
        %v852 = vld [vmem:[#allocation9 + $0x320] sm:$0xff]
        %v853 = vld [vmem:[#allocation9 + $0x328] sm:$0xff]
        %v854 = vld [vmem:[#allocation9 + $0x330] sm:$0xff]
        %v855 = vld [vmem:[#allocation9 + $0x338] sm:$0xff]
        %v856 = vld [vmem:[#allocation9 + $0x340] sm:$0xff]
        %v857 = vld [vmem:[#allocation9 + $0x348] sm:$0xff]
        %v858 = vld [vmem:[#allocation9 + $0x350] sm:$0xff]
        %v859 = vld [vmem:[#allocation9 + $0x358] sm:$0xff]
        %v860 = vld [vmem:[#allocation9 + $0x360] sm:$0xff]
        %v861 = vld [vmem:[#allocation9 + $0x368] sm:$0xff]
        %v862 = vld [vmem:[#allocation9 + $0x370] sm:$0xff]
        %v863 = vld [vmem:[#allocation9 + $0x378] sm:$0xff]
        %v864 = vld [vmem:[#allocation9 + $0x380] sm:$0xff]
        %v865 = vld [vmem:[#allocation9 + $0x388] sm:$0xff]
        %v866 = vld [vmem:[#allocation9 + $0x390] sm:$0xff]
        %v867 = vld [vmem:[#allocation9 + $0x398] sm:$0xff]
        %v868 = vld [vmem:[#allocation9 + $0x3a0] sm:$0xff]
        %v869 = vld [vmem:[#allocation9 + $0x3a8] sm:$0xff]
        %v870 = vld [vmem:[#allocation9 + $0x3b0] sm:$0xff]
        %v871 = vld [vmem:[#allocation9 + $0x3b8] sm:$0xff]
        %v872 = vld [vmem:[#allocation9 + $0x3c0] sm:$0xff]
        %v873 = vld [vmem:[#allocation9 + $0x3c8] sm:$0xff]
        %v874 = vld [vmem:[#allocation9 + $0x3d0] sm:$0xff]
        %v875 = vld [vmem:[#allocation9 + $0x3d8] sm:$0xff]
        %v876 = vld [vmem:[#allocation9 + $0x3e0] sm:$0xff]
        %v877 = vld [vmem:[#allocation9 + $0x3e8] sm:$0xff]
        %v878 = vld [vmem:[#allocation9 + $0x3f0] sm:$0xff]
        %v879 = vld [vmem:[#allocation9 + $0x3f8] sm:$0xff]
        %v880 = vld [vmem:[%s5] sm:$0x1]
        %v882 = vlaneseq
        %v883 = vshrl.u32 %v882, 7
        %v884 = vsub.s32 0, %v883
        %v885 = vrot.slane %v880, %v884
        %887 = vmatprep.subr.mxu0 0.0
        %888 = vmatpush1.msra.mxu0 %v752
        %889 = vmatprep.subr.mxu0 0.0
        %890 = vmatpush1.msra.mxu0 %v753
        %891 = vmatprep.subr.mxu0 0.0
        %892 = vmatpush1.msra.mxu0 %v754
        %893 = vmatprep.subr.mxu0 0.0
        %894 = vmatpush1.msra.mxu0 %v755
        %895 = vmatprep.subr.mxu0 0.0
        %896 = vmatpush1.msra.mxu0 %v756
        %897 = vmatprep.subr.mxu0 0.0
        %898 = vmatpush1.msra.mxu0 %v757
        %899 = vmatprep.subr.mxu0 0.0
        %900 = vmatpush1.msra.mxu0 %v758
        %901 = vmatprep.subr.mxu0 0.0
        %902 = vmatpush1.msra.mxu0 %v759
        %903 = vmatprep.subr.mxu0 0.0
        %904 = vmatpush1.msra.mxu0 %v760
        %905 = vmatprep.subr.mxu0 0.0
        %906 = vmatpush1.msra.mxu0 %v761
        %907 = vmatprep.subr.mxu0 0.0
        %908 = vmatpush1.msra.mxu0 %v762
        %909 = vmatprep.subr.mxu0 0.0
        %910 = vmatpush1.msra.mxu0 %v763
        %911 = vmatprep.subr.mxu0 0.0
        %912 = vmatpush1.msra.mxu0 %v764
        %913 = vmatprep.subr.mxu0 0.0
        %914 = vmatpush1.msra.mxu0 %v765
        %915 = vmatprep.subr.mxu0 0.0
        %916 = vmatpush1.msra.mxu0 %v766
        %917 = vmatprep.subr.mxu0 0.0
        %918 = vmatpush1.msra.mxu0 %v767
        %919 = vmatprep.subr.mxu0 0.0
        %920 = vmatpush1.msra.mxu0 %v768
        %921 = vmatprep.subr.mxu0 0.0
        %922 = vmatpush1.msra.mxu0 %v769
        %923 = vmatprep.subr.mxu0 0.0
        %924 = vmatpush1.msra.mxu0 %v770
        %925 = vmatprep.subr.mxu0 0.0
        %926 = vmatpush1.msra.mxu0 %v771
        %927 = vmatprep.subr.mxu0 0.0
        %928 = vmatpush1.msra.mxu0 %v772
        %929 = vmatprep.subr.mxu0 0.0
        %930 = vmatpush1.msra.mxu0 %v773
        %931 = vmatprep.subr.mxu0 0.0
        %932 = vmatpush1.msra.mxu0 %v774
        %933 = vmatprep.subr.mxu0 0.0
        %934 = vmatpush1.msra.mxu0 %v775
        %935 = vmatprep.subr.mxu0 0.0
        %936 = vmatpush1.msra.mxu0 %v776
        %937 = vmatprep.subr.mxu0 0.0
        %938 = vmatpush1.msra.mxu0 %v777
        %939 = vmatprep.subr.mxu0 0.0
        %940 = vmatpush1.msra.mxu0 %v778
        %941 = vmatprep.subr.mxu0 0.0
        %942 = vmatpush1.msra.mxu0 %v779
        %943 = vmatprep.subr.mxu0 0.0
        %944 = vmatpush1.msra.mxu0 %v780
        %945 = vmatprep.subr.mxu0 0.0
        %946 = vmatpush1.msra.mxu0 %v781
        %947 = vmatprep.subr.mxu0 0.0
        %948 = vmatpush1.msra.mxu0 %v782
        %949 = vmatprep.subr.mxu0 0.0
        %950 = vmatpush1.msra.mxu0 %v783
        %951 = vmatprep.mubr.f32.mxu0 %v745
        %952 = vmatmul.mubr.f32.gmra.mrb[0].mxu0 %v744
        %v953 = vpop.f32.mrb[0].mxu0
        %v954 = vadd.f32 %v885, %v953
        %v955 = vpop.f32.mrb[0].mxu0
        %956 = vdwg.mxu0
        %957 = vmatprep.subr.mxu0 0.0
        %958 = vmatpush1.msra.mxu0 %v784
        %959 = vmatprep.subr.mxu0 0.0
        %960 = vmatpush1.msra.mxu0 %v785
        %961 = vmatprep.subr.mxu0 0.0
        %962 = vmatpush1.msra.mxu0 %v786
        %963 = vmatprep.subr.mxu0 0.0
        %964 = vmatpush1.msra.mxu0 %v787
        %965 = vmatprep.subr.mxu0 0.0
        %966 = vmatpush1.msra.mxu0 %v788
        %967 = vmatprep.subr.mxu0 0.0
        %968 = vmatpush1.msra.mxu0 %v789
        %969 = vmatprep.subr.mxu0 0.0
        %970 = vmatpush1.msra.mxu0 %v790
        %971 = vmatprep.subr.mxu0 0.0
        %972 = vmatpush1.msra.mxu0 %v791
        %973 = vmatprep.subr.mxu0 0.0
        %974 = vmatpush1.msra.mxu0 %v792
        %975 = vmatprep.subr.mxu0 0.0
        %976 = vmatpush1.msra.mxu0 %v793
        %977 = vmatprep.subr.mxu0 0.0
        %978 = vmatpush1.msra.mxu0 %v794
        %979 = vmatprep.subr.mxu0 0.0
        %980 = vmatpush1.msra.mxu0 %v795
        %981 = vmatprep.subr.mxu0 0.0
        %982 = vmatpush1.msra.mxu0 %v796
        %983 = vmatprep.subr.mxu0 0.0
        %984 = vmatpush1.msra.mxu0 %v797
        %985 = vmatprep.subr.mxu0 0.0
        %986 = vmatpush1.msra.mxu0 %v798
        %987 = vmatprep.subr.mxu0 0.0
        %988 = vmatpush1.msra.mxu0 %v799
        %989 = vmatprep.subr.mxu0 0.0
        %990 = vmatpush1.msra.mxu0 %v800
        %991 = vmatprep.subr.mxu0 0.0
        %992 = vmatpush1.msra.mxu0 %v801
        %993 = vmatprep.subr.mxu0 0.0
        %994 = vmatpush1.msra.mxu0 %v802
        %995 = vmatprep.subr.mxu0 0.0
        %996 = vmatpush1.msra.mxu0 %v803
        %997 = vmatprep.subr.mxu0 0.0
        %998 = vmatpush1.msra.mxu0 %v804
        %999 = vmatprep.subr.mxu0 0.0
        %1000 = vmatpush1.msra.mxu0 %v805
        %1001 = vmatprep.subr.mxu0 0.0
        %1002 = vmatpush1.msra.mxu0 %v806
        %1003 = vmatprep.subr.mxu0 0.0
        %1004 = vmatpush1.msra.mxu0 %v807
        %1005 = vmatprep.subr.mxu0 0.0
        %1006 = vmatpush1.msra.mxu0 %v808
        %1007 = vmatprep.subr.mxu0 0.0
        %1008 = vmatpush1.msra.mxu0 %v809
        %1009 = vmatprep.subr.mxu0 0.0
        %1010 = vmatpush1.msra.mxu0 %v810
        %1011 = vmatprep.subr.mxu0 0.0
        %1012 = vmatpush1.msra.mxu0 %v811
        %1013 = vmatprep.subr.mxu0 0.0
        %1014 = vmatpush1.msra.mxu0 %v812
        %1015 = vmatprep.subr.mxu0 0.0
        %1016 = vmatpush1.msra.mxu0 %v813
        %1017 = vmatprep.subr.mxu0 0.0
        %1018 = vmatpush1.msra.mxu0 %v814
        %1019 = vmatprep.subr.mxu0 0.0
        %1020 = vmatpush1.msra.mxu0 %v815
        %1021 = vmatprep.mubr.f32.mxu0 %v747
        %1022 = vmatmul.mubr.f32.gmra.mrb[0].mxu0 %v746
        %v1023 = vpop.f32.mrb[0].mxu0
        %v1024 = vadd.f32 %v954, %v1023
        %v1025 = vpop.f32.mrb[0].mxu0
        %1026 = vdwg.mxu0
        %1027 = vmatprep.subr.mxu0 0.0
        %1028 = vmatpush1.msra.mxu0 %v816
        %1029 = vmatprep.subr.mxu0 0.0
        %1030 = vmatpush1.msra.mxu0 %v817
        %1031 = vmatprep.subr.mxu0 0.0
        %1032 = vmatpush1.msra.mxu0 %v818
        %1033 = vmatprep.subr.mxu0 0.0
        %1034 = vmatpush1.msra.mxu0 %v819
        %1035 = vmatprep.subr.mxu0 0.0
        %1036 = vmatpush1.msra.mxu0 %v820
        %1037 = vmatprep.subr.mxu0 0.0
        %1038 = vmatpush1.msra.mxu0 %v821
        %1039 = vmatprep.subr.mxu0 0.0
        %1040 = vmatpush1.msra.mxu0 %v822
        %1041 = vmatprep.subr.mxu0 0.0
        %1042 = vmatpush1.msra.mxu0 %v823
        %1043 = vmatprep.subr.mxu0 0.0
        %1044 = vmatpush1.msra.mxu0 %v824
        %1045 = vmatprep.subr.mxu0 0.0
        %1046 = vmatpush1.msra.mxu0 %v825
        %1047 = vmatprep.subr.mxu0 0.0
        %1048 = vmatpush1.msra.mxu0 %v826
        %1049 = vmatprep.subr.mxu0 0.0
        %1050 = vmatpush1.msra.mxu0 %v827
        %1051 = vmatprep.subr.mxu0 0.0
        %1052 = vmatpush1.msra.mxu0 %v828
        %1053 = vmatprep.subr.mxu0 0.0
        %1054 = vmatpush1.msra.mxu0 %v829
        %1055 = vmatprep.subr.mxu0 0.0
        %1056 = vmatpush1.msra.mxu0 %v830
        %1057 = vmatprep.subr.mxu0 0.0
        %1058 = vmatpush1.msra.mxu0 %v831
        %1059 = vmatprep.subr.mxu0 0.0
        %1060 = vmatpush1.msra.mxu0 %v832
        %1061 = vmatprep.subr.mxu0 0.0
        %1062 = vmatpush1.msra.mxu0 %v833
        %1063 = vmatprep.subr.mxu0 0.0
        %1064 = vmatpush1.msra.mxu0 %v834
        %1065 = vmatprep.subr.mxu0 0.0
        %1066 = vmatpush1.msra.mxu0 %v835
        %1067 = vmatprep.subr.mxu0 0.0
        %1068 = vmatpush1.msra.mxu0 %v836
        %1069 = vmatprep.subr.mxu0 0.0
        %1070 = vmatpush1.msra.mxu0 %v837
        %1071 = vmatprep.subr.mxu0 0.0
        %1072 = vmatpush1.msra.mxu0 %v838
        %1073 = vmatprep.subr.mxu0 0.0
        %1074 = vmatpush1.msra.mxu0 %v839
        %1075 = vmatprep.subr.mxu0 0.0
        %1076 = vmatpush1.msra.mxu0 %v840
        %1077 = vmatprep.subr.mxu0 0.0
        %1078 = vmatpush1.msra.mxu0 %v841
        %1079 = vmatprep.subr.mxu0 0.0
        %1080 = vmatpush1.msra.mxu0 %v842
        %1081 = vmatprep.subr.mxu0 0.0
        %1082 = vmatpush1.msra.mxu0 %v843
        %1083 = vmatprep.subr.mxu0 0.0
        %1084 = vmatpush1.msra.mxu0 %v844
        %1085 = vmatprep.subr.mxu0 0.0
        %1086 = vmatpush1.msra.mxu0 %v845
        %1087 = vmatprep.subr.mxu0 0.0
        %1088 = vmatpush1.msra.mxu0 %v846
        %1089 = vmatprep.subr.mxu0 0.0
        %1090 = vmatpush1.msra.mxu0 %v847
        %1091 = vmatprep.mubr.f32.mxu0 %v749
        %1092 = vmatmul.mubr.f32.gmra.mrb[0].mxu0 %v748
        %v1093 = vpop.f32.mrb[0].mxu0
        %v1094 = vadd.f32 %v1024, %v1093
        %v1095 = vpop.f32.mrb[0].mxu0
        %1096 = vdwg.mxu0
        %1097 = vmatprep.subr.mxu0 0.0
        %1098 = vmatpush1.msra.mxu0 %v848
        %1099 = vmatprep.subr.mxu0 0.0
        %1100 = vmatpush1.msra.mxu0 %v849
        %1101 = vmatprep.subr.mxu0 0.0
        %1102 = vmatpush1.msra.mxu0 %v850
        %1103 = vmatprep.subr.mxu0 0.0
        %1104 = vmatpush1.msra.mxu0 %v851
        %1105 = vmatprep.subr.mxu0 0.0
        %1106 = vmatpush1.msra.mxu0 %v852
        %1107 = vmatprep.subr.mxu0 0.0
        %1108 = vmatpush1.msra.mxu0 %v853
        %1109 = vmatprep.subr.mxu0 0.0
        %1110 = vmatpush1.msra.mxu0 %v854
        %1111 = vmatprep.subr.mxu0 0.0
        %1112 = vmatpush1.msra.mxu0 %v855
        %1113 = vmatprep.subr.mxu0 0.0
        %1114 = vmatpush1.msra.mxu0 %v856
        %1115 = vmatprep.subr.mxu0 0.0
        %1116 = vmatpush1.msra.mxu0 %v857
        %1117 = vmatprep.subr.mxu0 0.0
        %1118 = vmatpush1.msra.mxu0 %v858
        %1119 = vmatprep.subr.mxu0 0.0
        %1120 = vmatpush1.msra.mxu0 %v859
        %1121 = vmatprep.subr.mxu0 0.0
        %1122 = vmatpush1.msra.mxu0 %v860
        %1123 = vmatprep.subr.mxu0 0.0
        %1124 = vmatpush1.msra.mxu0 %v861
        %1125 = vmatprep.subr.mxu0 0.0
        %1126 = vmatpush1.msra.mxu0 %v862
        %1127 = vmatprep.subr.mxu0 0.0
        %1128 = vmatpush1.msra.mxu0 %v863
        %1129 = vmatprep.subr.mxu0 0.0
        %1130 = vmatpush1.msra.mxu0 %v864
        %1131 = vmatprep.subr.mxu0 0.0
        %1132 = vmatpush1.msra.mxu0 %v865
        %1133 = vmatprep.subr.mxu0 0.0
        %1134 = vmatpush1.msra.mxu0 %v866
        %1135 = vmatprep.subr.mxu0 0.0
        %1136 = vmatpush1.msra.mxu0 %v867
        %1137 = vmatprep.subr.mxu0 0.0
        %1138 = vmatpush1.msra.mxu0 %v868
        %1139 = vmatprep.subr.mxu0 0.0
        %1140 = vmatpush1.msra.mxu0 %v869
        %1141 = vmatprep.subr.mxu0 0.0
        %1142 = vmatpush1.msra.mxu0 %v870
        %1143 = vmatprep.subr.mxu0 0.0
        %1144 = vmatpush1.msra.mxu0 %v871
        %1145 = vmatprep.subr.mxu0 0.0
        %1146 = vmatpush1.msra.mxu0 %v872
        %1147 = vmatprep.subr.mxu0 0.0
        %1148 = vmatpush1.msra.mxu0 %v873
        %1149 = vmatprep.subr.mxu0 0.0
        %1150 = vmatpush1.msra.mxu0 %v874
        %1151 = vmatprep.subr.mxu0 0.0
        %1152 = vmatpush1.msra.mxu0 %v875
        %1153 = vmatprep.subr.mxu0 0.0
        %1154 = vmatpush1.msra.mxu0 %v876
        %1155 = vmatprep.subr.mxu0 0.0
        %1156 = vmatpush1.msra.mxu0 %v877
        %1157 = vmatprep.subr.mxu0 0.0
        %1158 = vmatpush1.msra.mxu0 %v878
        %1159 = vmatprep.subr.mxu0 0.0
        %1160 = vmatpush1.msra.mxu0 %v879
        %1161 = vmatprep.mubr.f32.mxu0 %v751
        %1162 = vmatmul.mubr.f32.gmra.mrb[0].mxu0 %v750
        %v1163 = vpop.f32.mrb[0].mxu0
        %v1164 = vadd.f32 %v1094, %v1163
        %v1165 = vpop.f32.mrb[0].mxu0
        %1166 = vdwg.mxu0
        %v1167 = vtanh.pop %v1164
        %1168 = vst [vmem:[%s270] sm:$0xff] %v1167
        %s1169 = sand.u32 %s143, 1
        %s1170 = scalar_lea.sflag [#allocation6], %s1169
        %s1171 = sand.u32 %s143, 1
        %s1172 = smul.addr %s1171, 8
        %s1173 = scalar_lea.vmem [#allocation10], %s1172
        // Predicated region
        $region53: #{tpu_custom_call.1} parent=39 // pred_check
          %p1174 = pneg %p153
        $region54: #{tpu_custom_call.1} parent=39 // pred_check_branch
          %1176 = sbr.rel (%p1174) target = $region56
        $region55: #{tpu_custom_call.1} parent=39 // pred_region
          %s1178 = ssub.s32 128, 128
          %1179 = vsyncadd %s1170, %s1178
          %s1180 = smul.addr %s25, 128
          %s1181 = scalar_lea.hbm %s6, %s1180
          %s1183 = sshll.u32 %s1173, 4
          %s1184 = int_to_ptr.vmem [resolvable:$true] %s1183
          %1186 = dma.vmem_to_hbm [thread:$0]  %s1184, 128, %s1181, %s1170
        $region56: #{tpu_custom_call.1} parent=39 // pred_fallthru
          _
      $region40: #{tpu_custom_call.1} parent=5 // pred_fallthru
        _
      %p1187 = scmp.le.s32.totalorder 2, %s20
      // Predicated region
      $region57: #{tpu_custom_call.1} parent=5 // pred_check
        %p1188 = pneg %p1187
      $region58: #{tpu_custom_call.1} parent=5 // pred_check_branch
        %1190 = sbr.rel (%p1188) target = $region60
      $region59: #{tpu_custom_call.1} parent=5 // pred_region
        %s1191 = ssub.s32 %s20, 2
        // Predicated region
        $region61: #{tpu_custom_call.1} parent=59 // pred_check
          %p1192 = pneg %p159
        $region62: #{tpu_custom_call.1} parent=59 // pred_check_branch
          %1194 = sbr.rel (%p1192) target = $region64
        $region63: #{tpu_custom_call.1} parent=59 // pred_region
          %s1195 = sand.u32 %s144, 1
          %s1196 = scalar_lea.sflag [#allocation6], %s1195
          %s1197 = sand.u32 %s144, 1
          %s1198 = smul.addr %s1197, 8
          %s1199 = scalar_lea.vmem [#allocation10], %s1198
          %1200 = dma.done %s1196, 128
        $region64: #{tpu_custom_call.1} parent=59 // pred_fallthru
          _
      $region60: #{tpu_custom_call.1} parent=5 // pred_fallthru
        _
    $region6: #{tpu_custom_call.1} parent=1 // loop_footer
      %s24 = sadd.s32 1, %s20
    $region7: #{tpu_custom_call.1} parent=1 // loop_footer_branch
      %19 = sbr.rel target = $region3
    $region8: #{tpu_custom_call.1} parent=1 // loop_exit
      _
    %1201 = vsyncpa [#allocation5], 1
    %s1202 = scalar_lea.sflag [#allocation5], 1
    %1203 = vsyncpa %s1202, 1
    %1204 = vsyncpa [#allocation8], 1
    %1205 = vsyncpa [#allocation6], 1
    %s1206 = scalar_lea.sflag [#allocation6], 1
    %1207 = vsyncpa %s1206, 1

</llo_original>
